<compile_context>
chip_gen: v7x
topology: tpu7x:2x2x1
jax: 0.10.0
libtpu: 0.0.40
codegen_flags: <defaults>
</compile_context>

<pallas_src>
import functools

import jax
import jax.numpy as jnp
from jax.experimental import pallas as pl
from jax.experimental.pallas import tpu as pltpu


def _store_dual(out_f32, o_ref):
    """Write cat((q, k, k, q, v), -1) of an H-wide matmul result into o_ref."""
    H = out_f32.shape[-1]
    h3 = H // 2          # out_dim // 3
    h6 = H // 4          # out_dim // 6
    q = out_f32[:, :h6]
    k = out_f32[:, h6:h3]
    v = out_f32[:, h3:]
    if h6 % 128 == 0:
        # Lane-aligned boundaries: duplicate via extra (cheap, unmasked) stores.
        o_ref[:, 0 * h6:1 * h6] = q.astype(o_ref.dtype)
        o_ref[:, 1 * h6:2 * h6] = k.astype(o_ref.dtype)
        o_ref[:, 2 * h6:3 * h6] = k.astype(o_ref.dtype)
        o_ref[:, 3 * h6:4 * h6] = q.astype(o_ref.dtype)
        o_ref[:, 4 * h6:] = v.astype(o_ref.dtype)
    else:
        # Unaligned boundaries: build the tile in vregs and do one dense store.
        o_ref[...] = jnp.concatenate([q, k, k, q, v], axis=-1).astype(o_ref.dtype)


def _dual_kernel(x_ref, w_ref, o_ref):
    # Whole contraction dim resident: single MXU matmul per row tile.
    out = jnp.dot(x_ref[...], w_ref[...], preferred_element_type=jnp.float32)
    _store_dual(out, o_ref)


def _dual_kernel_ktiled(x_ref, w_ref, o_ref, acc_ref):
    # K (in_dim) tiled: accumulate in f32 VMEM scratch, write once at k==last.
    kk = pl.program_id(1)

    @pl.when(kk == 0)
    def _():
        acc_ref[...] = jnp.zeros_like(acc_ref)

    acc_ref[...] += jnp.dot(x_ref[...], w_ref[...],
                            preferred_element_type=jnp.float32)

    @pl.when(kk == pl.num_programs(1) - 1)
    def _():
        _store_dual(acc_ref[...], o_ref)


@functools.partial(
    jax.jit,
    static_argnames=("out_dim", "row_tile", "compute_dtype", "w_transposed",
                     "k_tile"))
def dual_fixed_linear(x, w, *, out_dim, row_tile=None,
                      compute_dtype=jnp.bfloat16, w_transposed=False,
                      k_tile=None):
    """DualFixedLinear forward.

    x: [B, S, in_dim]
    w: [H, in_dim] (PyTorch nn.Linear layout, H = 2*out_dim//3), or
       [in_dim, H] if w_transposed=True (lets callers hoist/cache the
       transpose+cast outside the per-call path).
    Returns [B, S, out_dim] in x's dtype.
    """
    B, S, in_dim = x.shape
    H = w.shape[1] if w_transposed else w.shape[0]
    assert out_dim % 6 == 0 and H == 2 * out_dim // 3

    out_dtype = x.dtype
    if compute_dtype is None:
        compute_dtype = x.dtype
    comp_isz = jnp.dtype(compute_dtype).itemsize
    out_isz = jnp.dtype(out_dtype).itemsize

    w_t = (w if w_transposed else w.T).astype(compute_dtype)   # [in_dim, H]
    x2 = x.reshape(B * S, in_dim).astype(compute_dtype)
    M = B * S

    # --- Generation-aware VMEM capacity (v5e/v6e: 128 MiB, v7x: 64 MiB). ---
    try:
        vmem_cap = int(pltpu.get_tpu_info().vmem_capacity_bytes)
    except Exception:       # pragma: no cover - conservative fallback
        vmem_cap = 64 << 20

    weight_bytes = in_dim * H * comp_isz

    # --- K (in_dim) tiling: bound weight residency when the weight is big. ---
    use_k = False
    tk = in_dim
    if k_tile is not None:
        assert in_dim % k_tile == 0, "k_tile must divide in_dim"
        if k_tile < in_dim:
            tk, use_k = k_tile, True
    elif weight_bytes > (16 << 20):
        for cand in (2048, 1024, 512, 256, 128):
            if in_dim % cand == 0 and cand < in_dim:
                tk, use_k = cand, True
                break
        # TODO(synk): also tile the output-column (N) axis when in_dim has no
        # multiple-of-128 divisor or out_dim itself is very large.

    sub = 16 if comp_isz == 2 else 8   # sublane-aligned row tiles

    if use_k:
        # Weight block changes every k step -> keep it double-buffered.
        weight_resident = 2 * tk * H * comp_isz
        per_row = 2 * tk * comp_isz + 2 * out_dim * out_isz + H * 4  # + f32 acc
        single_buffer_weight = False
    else:
        # Constant index_map: drop to a single resident copy once the weight is
        # big enough to matter (tiny weights keep the default double buffer).
        single_buffer_weight = weight_bytes > (4 << 20)
        weight_resident = (1 if single_buffer_weight else 2) * weight_bytes
        per_row = 2 * in_dim * comp_isz + 2 * out_dim * out_isz

    # --- Row tile: biggest sublane-aligned tile that fits the VMEM budget. ---
    budget = int(vmem_cap * 0.85) - weight_resident
    if row_tile is None:
        tile = min(2048, max(sub, budget // max(per_row, 1)))
    else:
        tile = row_tile
    tile = min(tile, ((M + sub - 1) // sub) * sub)   # don't exceed (rounded) M
    tile = max(sub, (tile // sub) * sub)

    grid_m = pl.cdiv(M, tile)   # ragged last block handled by Pallas masking

    vmem_need = weight_resident + tile * per_row
    vmem_limit = int(min(vmem_cap - (4 << 20),
                         max(vmem_need + (8 << 20), 32 << 20)))

    cost = pl.CostEstimate(
        flops=2 * M * in_dim * H,
        transcendentals=0,
        bytes_accessed=(M * in_dim * comp_isz
                        + in_dim * H * comp_isz
                        + M * out_dim * out_isz),
    )

    if use_k:
        grid = (grid_m, in_dim // tk)
        in_specs = [
            pl.BlockSpec((tile, tk), lambda i, kk: (i, kk)),
            pl.BlockSpec((tk, H), lambda i, kk: (kk, 0)),
        ]
        out_specs = pl.BlockSpec((tile, out_dim), lambda i, kk: (i, 0))
        scratch_shapes = [pltpu.VMEM((tile, H), jnp.float32)]
        kernel = _dual_kernel_ktiled
        dims = ("parallel", "arbitrary")
    else:
        if single_buffer_weight:
            w_spec = pl.BlockSpec((in_dim, H), lambda i: (0, 0),
                                  pipeline_mode=pl.Buffered(1))
        else:
            w_spec = pl.BlockSpec((in_dim, H), lambda i: (0, 0))
        grid = (grid_m,)
        in_specs = [
            pl.BlockSpec((tile, in_dim), lambda i: (i, 0)),
            w_spec,
        ]
        out_specs = pl.BlockSpec((tile, out_dim), lambda i: (i, 0))
        scratch_shapes = []
        kernel = _dual_kernel
        dims = ("parallel",)

    out2 = pl.pallas_call(
        kernel,
        out_shape=jax.ShapeDtypeStruct((M, out_dim), out_dtype),
        grid=grid,
        in_specs=in_specs,
        out_specs=out_specs,
        scratch_shapes=scratch_shapes,
        compiler_params=pltpu.CompilerParams(
            dimension_semantics=dims,
            vmem_limit_bytes=vmem_limit,
        ),
        cost_estimate=cost,
    )(x2, w_t)

    return out2.reshape(B, S, out_dim)


def _reference(x, w, out_dim):
    out = jnp.einsum("bsi,hi->bsh", x, w)
    h = out.shape[-1]
    qk, v = out[..., :h // 2], out[..., h // 2:]
    q, k = qk[..., :h // 4], qk[..., h // 4:]
    return jnp.concatenate([q, k, k, q, v], axis=-1)


if __name__ == "__main__":
    key = jax.random.PRNGKey(0)
    kx, kw, kx2, kw2, kx3, kw3 = jax.random.split(key, 6)

    # --- Small, unaligned shapes (out_dim//6 = 8): in-kernel concat path. ---
    B, S, in_dim, out_dim = 2, 8, 32, 48
    H = 2 * out_dim // 3
    x = jax.random.normal(kx, (B, S, in_dim), dtype=jnp.float32)
    w = jax.random.normal(kw, (H, in_dim), dtype=jnp.float32) * (1.0 / in_dim ** 0.5)
    y_ref = _reference(x, w, out_dim)

    # Exact f32 compute.
    y = jax.block_until_ready(
        dual_fixed_linear(x, w, out_dim=out_dim, compute_dtype=jnp.float32))
    assert y.shape == (B, S, out_dim)
    assert jnp.allclose(y, y_ref, atol=1e-5, rtol=1e-5)

    # Default bf16 MXU compute (f32 accumulation) -> looser tolerance.
    y_bf16 = jax.block_until_ready(dual_fixed_linear(x, w, out_dim=out_dim))
    assert jnp.allclose(y_bf16, y_ref, atol=5e-2, rtol=5e-2)

    # --- Lane-aligned shapes (out_dim//6 = 128): direct slice-store path. ---
    B2, S2, in_dim2, out_dim2 = 2, 16, 128, 768
    H2 = 2 * out_dim2 // 3
    x2 = jax.random.normal(kx2, (B2, S2, in_dim2), dtype=jnp.float32)
    w2 = jax.random.normal(kw2, (H2, in_dim2), dtype=jnp.float32) * (1.0 / in_dim2 ** 0.5)
    y2 = jax.block_until_ready(
        dual_fixed_linear(x2, w2, out_dim=out_dim2, compute_dtype=jnp.float32))
    y2_ref = _reference(x2, w2, out_dim2)
    assert y2.shape == (B2, S2, out_dim2)
    assert jnp.allclose(y2, y2_ref, atol=1e-4, rtol=1e-4)

    # --- Force the K-tiled accumulator path at a small shape (k_tile=128). ---
    B3, S3, in_dim3, out_dim3 = 2, 8, 256, 192
    H3 = 2 * out_dim3 // 3
    x3 = jax.random.normal(kx3, (B3, S3, in_dim3), dtype=jnp.float32)
    w3 = jax.random.normal(kw3, (H3, in_dim3), dtype=jnp.float32) * (1.0 / in_dim3 ** 0.5)
    y3 = jax.block_until_ready(
        dual_fixed_linear(x3, w3, out_dim=out_dim3,
                          compute_dtype=jnp.float32, k_tile=128))
    y3_ref = _reference(x3, w3, out_dim3)
    assert y3.shape == (B3, S3, out_dim3)
    assert jnp.allclose(y3, y3_ref, atol=1e-4, rtol=1e-4)

    print("KERNEL_OK")
</pallas_src>

<mosaic_0001>
module attributes {stable_mosaic.version = 11 : i64} {
  func.func @_dual_kernel(%arg0: i32, %arg1: memref<16x32xf32, #tpu.memory_space<vmem>>, %arg2: memref<32x32xf32, #tpu.memory_space<vmem>>, %arg3: memref<16x48xf32, #tpu.memory_space<vmem>>) attributes {dimension_semantics = [#tpu.dimension_semantics<parallel>], iteration_bounds = array<i64: 1>, scalar_prefetch = 0 : i64, scratch_operands = 0 : i64, tpu.core_type = #tpu.core_type<tc>, window_params = [{transform_indices = @transform_0, window_bounds = array<i64: 16, 32>}, {pipeline_mode = #tpu.pipeline_mode<synchronous>, transform_indices = @transform_1, window_bounds = array<i64: 32, 32>}, {transform_indices = @transform_2, window_bounds = array<i64: 16, 48>}]} {
    %c0 = arith.constant 0 : index
    %c0_0 = arith.constant 0 : index
    %0 = vector.load %arg1[%c0, %c0_0] : memref<16x32xf32, #tpu.memory_space<vmem>>, vector<16x32xf32>
    %c0_1 = arith.constant 0 : index
    %c0_2 = arith.constant 0 : index
    %1 = vector.load %arg2[%c0_1, %c0_2] : memref<32x32xf32, #tpu.memory_space<vmem>>, vector<32x32xf32>
    %cst = arith.constant dense<0.000000e+00> : vector<16x32xf32>
    %2 = tpu.matmul %0, %1, %cst {dimension_numbers = #tpu.dot_dimension_numbers<[1], [0], [0], [1], [0, 0, 1, 1], [], []>} : vector<16x32xf32>, vector<32x32xf32>, vector<16x32xf32> -> vector<16x32xf32>
    %3 = vector.extract_strided_slice %2 {offsets = [0, 0], sizes = [16, 8], strides = [1, 1]} : vector<16x32xf32> to vector<16x8xf32>
    %4 = vector.extract_strided_slice %2 {offsets = [0, 8], sizes = [16, 8], strides = [1, 1]} : vector<16x32xf32> to vector<16x8xf32>
    %5 = vector.extract_strided_slice %2 {offsets = [0, 16], sizes = [16, 16], strides = [1, 1]} : vector<16x32xf32> to vector<16x16xf32>
    %6 = tpu.concatenate %3, %4, %4, %3, %5 in 1 : vector<16x8xf32>, vector<16x8xf32>, vector<16x8xf32>, vector<16x8xf32>, vector<16x16xf32> -> vector<16x48xf32>
    %c0_3 = arith.constant 0 : index
    %c0_4 = arith.constant 0 : index
    %7 = vector.load %arg3[%c0_3, %c0_4] : memref<16x48xf32, #tpu.memory_space<vmem>>, vector<16x48xf32>
    tpu.vector_store %arg3[%c0_3, %c0_4], %6 {strides = array<i32>} : memref<16x48xf32, #tpu.memory_space<vmem>>, vector<16x48xf32>,
    return
  }
  func.func @transform_0(%arg0: i32) -> (i32, i32) {
    %c0_i32 = arith.constant 0 : i32
    %c0_i32_0 = arith.constant 0 : i32
    return %arg0, %c0_i32 : i32, i32
  }
  func.func @transform_1(%arg0: i32) -> (i32, i32) {
    %c0_i32 = arith.constant 0 : i32
    %c0_i32_0 = arith.constant 0 : i32
    %c0_i32_1 = arith.constant 0 : i32
    return %c0_i32, %c0_i32_0 : i32, i32
  }
  func.func @transform_2(%arg0: i32) -> (i32, i32) {
    %c0_i32 = arith.constant 0 : i32
    %c0_i32_0 = arith.constant 0 : i32
    return %arg0, %c0_i32 : i32, i32
  }
}

</mosaic_0001>

<llo_original>
// kernel: dual_fixed_linear.1
$region0: #{dual_fixed_linear.1}
  #allocation0 [shape = 'u32[]', space=smem, size = 0x4, offset = 0x4, fixed_abs, tag = 'smem constant byte address 0x4 - core index']
  #allocation1 [shape = 'u32[144,128]{1,0:T(1,128)}', space=vmem, size = 0x12000, scoped, tag = 'internal scratch']
  %s0 = inlined_call_operand.vmem [shape: f32[16,32], index: 0, kind: input, shape index: {}]
  %s1 = inlined_call_operand.vmem [shape: f32[32,32], index: 1, kind: input, shape index: {}]
  %s2 = inlined_call_operand.hbm [shape: f32[16,48], index: 2, kind: output, shape index: {}]
  %s3 = sld [smem:[#allocation0]]
  $region18: #{dual_fixed_linear.1} parent=0
    _
  %s5 = ssub.s32 1, %s3
  %s6 = scalar_select 0, %s5, %s3
  $region1: #{dual_fixed_linear.1} parent=0
    #allocation2 [shape = 'u8[8192]{0}', space=vmem, size = 0x2000, scoped, tag = 'output window, operand 0, single buffered']
    #allocation3 [shape = 's32[1]{0}', space=sflag, size = 0x4, scoped, tag = 'scoped memory for dual_fixed_linear.1']
    %7 = vsyncpa [#allocation3], 0
    // Predicated region
    $region2: #{dual_fixed_linear.1} parent=1 // pred_check
      _
    $region3: #{dual_fixed_linear.1} parent=1 // pred_check_branch
      %9 = sbr.rel (0) target = $region5
    $region4: #{dual_fixed_linear.1} parent=1 // pred_region
      _
    $region5: #{dual_fixed_linear.1} parent=1 // pred_fallthru
      _
    // Predicated region
    $region6: #{dual_fixed_linear.1} parent=1 // pred_check
      _
    $region7: #{dual_fixed_linear.1} parent=1 // pred_check_branch
      %11 = sbr.rel (0) target = $region9
    $region8: #{dual_fixed_linear.1} parent=1 // pred_region
      _
    $region9: #{dual_fixed_linear.1} parent=1 // pred_fallthru
      _
    %v12 = vld [vmem:[%s0] sm:$0xff]
    %v13 = vld [vmem:[%s0 + $0x8] sm:$0xff]
    %v14 = vld [vmem:[%s1] sm:$0xff]
    %v15 = vld [vmem:[%s1 + $0x8] sm:$0xff]
    %v16 = vld [vmem:[%s1 + $0x10] sm:$0xff]
    %v17 = vld [vmem:[%s1 + $0x18] sm:$0xff]
    %vm18 = vcmask 261120
    %v20 = vsel %vm18, %v12, 0
    %v23 = vsel %vm18, %v13, 0
    %25 = vmatprep.subr.mxu0 0.0
    %26 = vmatpush1.msra.mxu0 %v14
    %27 = vmatprep.subr.mxu0 0.0
    %28 = vmatpush1.msra.mxu0 %v15
    %29 = vmatprep.subr.mxu0 0.0
    %30 = vmatpush1.msra.mxu0 %v16
    %31 = vmatprep.subr.mxu0 0.0
    %32 = vmatpush1.msra.mxu0 %v17
    %33 = vmatprep.subr.mxu0 0.0
    %34 = vmatpush1.msra.mxu0 0.0
    %35 = vmatprep.subr.mxu0 0.0
    %36 = vmatpush1.msra.mxu0 0.0
    %37 = vmatprep.subr.mxu0 0.0
    %38 = vmatpush1.msra.mxu0 0.0
    %39 = vmatprep.subr.mxu0 0.0
    %40 = vmatpush1.msra.mxu0 0.0
    %41 = vmatprep.subr.mxu0 0.0
    %42 = vmatpush1.msra.mxu0 0.0
    %43 = vmatprep.subr.mxu0 0.0
    %44 = vmatpush1.msra.mxu0 0.0
    %45 = vmatprep.subr.mxu0 0.0
    %46 = vmatpush1.msra.mxu0 0.0
    %47 = vmatprep.subr.mxu0 0.0
    %48 = vmatpush1.msra.mxu0 0.0
    %49 = vmatprep.subr.mxu0 0.0
    %50 = vmatpush1.msra.mxu0 0.0
    %51 = vmatprep.subr.mxu0 0.0
    %52 = vmatpush1.msra.mxu0 0.0
    %53 = vmatprep.subr.mxu0 0.0
    %54 = vmatpush1.msra.mxu0 0.0
    %55 = vmatprep.subr.mxu0 0.0
    %56 = vmatpush1.msra.mxu0 0.0
    %57 = vmatprep.subr.mxu0 0.0
    %58 = vmatpush1.msra.mxu0 0.0
    %59 = vmatprep.subr.mxu0 0.0
    %60 = vmatpush1.msra.mxu0 0.0
    %61 = vmatprep.subr.mxu0 0.0
    %62 = vmatpush1.msra.mxu0 0.0
    %63 = vmatprep.subr.mxu0 0.0
    %64 = vmatpush1.msra.mxu0 0.0
    %65 = vmatprep.subr.mxu0 0.0
    %66 = vmatpush1.msra.mxu0 0.0
    %67 = vmatprep.subr.mxu0 0.0
    %68 = vmatpush1.msra.mxu0 0.0
    %69 = vmatprep.subr.mxu0 0.0
    %70 = vmatpush1.msra.mxu0 0.0
    %71 = vmatprep.subr.mxu0 0.0
    %72 = vmatpush1.msra.mxu0 0.0
    %73 = vmatprep.subr.mxu0 0.0
    %74 = vmatpush1.msra.mxu0 0.0
    %75 = vmatprep.subr.mxu0 0.0
    %76 = vmatpush1.msra.mxu0 0.0
    %77 = vmatprep.subr.mxu0 0.0
    %78 = vmatpush1.msra.mxu0 0.0
    %79 = vmatprep.subr.mxu0 0.0
    %80 = vmatpush1.msra.mxu0 0.0
    %81 = vmatprep.subr.mxu0 0.0
    %82 = vmatpush1.msra.mxu0 0.0
    %83 = vmatprep.subr.mxu0 0.0
    %84 = vmatpush1.msra.mxu0 0.0
    %85 = vmatprep.subr.mxu0 0.0
    %86 = vmatpush1.msra.mxu0 0.0
    %87 = vmatprep.subr.mxu0 0.0
    %88 = vmatpush1.msra.mxu0 0.0
    %89 = vmatprep.mubr.f32.mxu0 0.0
    %90 = vmatmul.mubr.f32.gmra.mrb[0].mxu0 %v20
    %v91 = vpop.f32.mrb[0].mxu0
    %v92 = vadd.f32 0.0, %v91
    %v93 = vpop.f32.mrb[0].mxu0
    %94 = vmatprep.mubr.f32.mxu0 0.0
    %95 = vmatmul.mubr.f32.gmra.mrb[0].mxu0 %v23
    %v96 = vpop.f32.mrb[0].mxu0
    %v97 = vadd.f32 0.0, %v96
    %v98 = vpop.f32.mrb[0].mxu0
    %99 = vdwg.mxu0
    %102 = vrot.lane.b32.xlu0 %v92, 8
    %v103 = vpop.permute.xlu0 %102
    %104 = vrot.lane.b32.xlu0 %v97, 8
    %v105 = vpop.permute.xlu0 %104
    %108 = vrot.lane.b32.xlu0 %v92, 24
    %v109 = vpop.permute.xlu0 %108
    %110 = vrot.lane.b32.xlu0 %v97, 24
    %v111 = vpop.permute.xlu0 %110
    %114 = vrot.lane.b32.xlu0 %v92, 16
    %v115 = vpop.permute.xlu0 %114
    %116 = vrot.lane.b32.xlu0 %v97, 16
    %v117 = vpop.permute.xlu0 %116
    %vm120 = vcmask 130048
    %v121 = vsel %vm120, %v92, %v103
    %v122 = vsel %vm120, %v97, %v105
    %vm123 = vcmask 195584
    %v124 = vsel %vm123, %v121, %v109
    %v125 = vsel %vm123, %v122, %v111
    %v126 = vsel %vm18, %v124, %v115
    %v127 = vsel %vm18, %v125, %v117
    %vm128 = vcmask 392192
    %129 = vst.msk [vmem:[#allocation2] sm:$0xff] %vm128, %v126
    %130 = vst.msk [vmem:[#allocation2 + $0x8] sm:$0xff] %vm128, %v127
    // Predicated region
    $region10: #{dual_fixed_linear.1} parent=1 // pred_check
      _
    $region11: #{dual_fixed_linear.1} parent=1 // pred_check_branch
      %132 = sbr.rel (0) target = $region13
    $region12: #{dual_fixed_linear.1} parent=1 // pred_region
      %s134 = ssub.s32 256, 256
      %135 = vsyncadd [#allocation3], %s134
      %s136 = sshll.u32 [#allocation2], 4
      %s137 = int_to_ptr.vmem [resolvable:$true] %s136
      %142 = dma.vmem_to_hbm [thread:$0]  %s137, 256, %s2, [#allocation3], 128, 128, 8
    $region13: #{dual_fixed_linear.1} parent=1 // pred_fallthru
      _
    // Predicated region
    $region14: #{dual_fixed_linear.1} parent=1 // pred_check
      _
    $region15: #{dual_fixed_linear.1} parent=1 // pred_check_branch
      %144 = sbr.rel (0) target = $region17
    $region16: #{dual_fixed_linear.1} parent=1 // pred_region
      %145 = dma.done [#allocation3], 256
    $region17: #{dual_fixed_linear.1} parent=1 // pred_fallthru
      _
    %146 = vsyncpa [#allocation3], 1

</llo_original>
